<compile_context>
chip_gen: v6e
topology: v6e:2x2x1
jax: 0.10.0
libtpu: 0.0.40
codegen_flags: <defaults>
</compile_context>

<pallas_src>
import functools
import math

import jax
import jax.numpy as jnp
from jax.experimental import pallas as pl
from jax.experimental.pallas import tpu as pltpu


def _vs_mha_kernel(x_ref, wqkv_ref, wo_ref, o_ref, *, H, dh, bt, S, m, mxu_dtype):
    rows = bt * S
    x = x_ref[...].astype(mxu_dtype)                          # (rows, m)

    # One wide QKV projection (scale already folded into the Q columns).
    qkv = jnp.dot(x, wqkv_ref[...],
                  preferred_element_type=jnp.float32)         # (rows, 3m) f32

    # [Q | K | V] column layout -> m-wide slices.
    q = qkv[:, 0:m]
    k = qkv[:, m:2 * m]
    v = qkv[:, 2 * m:3 * m]

    # Head split to a leading-batch (H*bt, S, dh) layout using dh-wide lane
    # slices + leading-dim reshapes/concat only (no lane-splitting reshapes).
    def split_heads(a):
        parts = [a[:, h * dh:(h + 1) * dh].reshape(bt, S, dh) for h in range(H)]
        return jnp.concatenate(parts, axis=0)                 # (H*bt, S, dh), (h, b) order

    qh = split_heads(q).astype(mxu_dtype)
    kh = split_heads(k).astype(mxu_dtype)
    vh = split_heads(v).astype(mxu_dtype)

    # Head-batched attention: bf16 MXU operands, f32 scores/softmax.
    # (S is small here; for S >~ 512 a KV grid axis with online softmax would
    #  replace the materialized (H*bt, S, S) score block.)
    scores = jnp.einsum('zqd,zkd->zqk', qh, kh,
                        preferred_element_type=jnp.float32)   # (H*bt, S, S)
    scores = scores - jnp.max(scores, axis=-1, keepdims=True)
    p = jnp.exp(scores)
    p = p * pl.reciprocal(jnp.sum(p, axis=-1, keepdims=True), approx=True)
    ctx = jnp.einsum('zqk,zkd->zqd', p.astype(mxu_dtype), vh,
                     preferred_element_type=jnp.float32)      # (H*bt, S, dh) f32

    # Head "concat" back to (rows, m) once, then ONE K = m output matmul.
    ctx_cat = jnp.concatenate(
        [ctx[h * bt:(h + 1) * bt].reshape(rows, dh) for h in range(H)], axis=-1)
    y = jnp.dot(ctx_cat.astype(mxu_dtype), wo_ref[...],
                preferred_element_type=jnp.float32)           # (rows, m)
    o_ref[...] = y.astype(o_ref.dtype)


def _pick_bt_tile(bt_total, S, target_rows=256, min_grid_steps=4):
    """Largest divisor of bt_total giving ~target_rows rows/step while keeping
    >= min_grid_steps grid steps (>= 2 per TensorCore on v7x) when possible."""
    divisors = [d for d in range(1, bt_total + 1) if bt_total % d == 0]
    candidates = [d for d in divisors if bt_total // d >= min_grid_steps] or [1]
    target = max(1, target_rows // S)
    under = [d for d in candidates if d <= target]
    return max(under) if under else min(candidates)


def visual_spatial_mha(q_in, wq, wk, wv, wo, H, mxu_dtype=jnp.bfloat16):
    """q_in: (B, T, m, S) f32; weights in PyTorch nn.Linear layout (out, in).
    Returns (B, T, S, m) f32, matching Visual_SpatialMultiHeadAttention.forward."""
    B, T, m, S = q_in.shape
    assert m % H == 0
    dh = m // H
    bt_total = B * T
    bt_tile = _pick_bt_tile(bt_total, S)
    rows_per_step = bt_tile * S
    scale = 1.0 / math.sqrt(dh)

    # Fused, pre-transposed QKV weight: columns [Q_all | K_all | V_all], with
    # the 1/sqrt(dh) scale folded into the Q columns.  Cast once to MXU dtype.
    wqkv = jnp.concatenate([wq.T * scale, wk.T, wv.T], axis=-1).astype(mxu_dtype)
    wo_t = wo.T.astype(mxu_dtype)

    # The module's q.transpose(2, 3) done once in XLA; the trailing reshape
    # only merges contiguous dims, giving a row-major (B*T*S, m) slab.
    x = jnp.transpose(q_in, (0, 1, 3, 2)).reshape(bt_total * S, m)

    # Explicit VMEM budget (v7x: 64 MiB physical, 32 MiB default scoped).
    w_itemsize = jnp.dtype(mxu_dtype).itemsize
    blk_bytes = rows_per_step * m * 4
    weight_bytes = (3 * m * m + m * m) * w_itemsize
    inter_bytes = (rows_per_step * 3 * m * 4              # qkv
                   + 3 * rows_per_step * m * 4            # head-split q/k/v
                   + 2 * bt_tile * H * S * S * 4          # scores + probs
                   + 2 * rows_per_step * m * 4)           # ctx + y
    need = 2 * (2 * blk_bytes) + 2 * weight_bytes + inter_bytes
    vmem_limit = int(min(64 * 1024 * 1024, max(32 * 1024 * 1024, 4 * need)))

    kernel = functools.partial(_vs_mha_kernel, H=H, dh=dh, bt=bt_tile, S=S, m=m,
                               mxu_dtype=mxu_dtype)
    out = pl.pallas_call(
        kernel,
        out_shape=jax.ShapeDtypeStruct((bt_total * S, m), jnp.float32),
        grid_spec=pltpu.PrefetchScalarGridSpec(
            num_scalar_prefetch=0,
            grid=(bt_total // bt_tile,),
            in_specs=[
                pl.BlockSpec((rows_per_step, m), lambda i: (i, 0)),   # activations
                pl.BlockSpec((m, 3 * m), lambda i: (0, 0)),           # fused QKV weight
                pl.BlockSpec((m, m), lambda i: (0, 0)),               # output weight
            ],
            out_specs=pl.BlockSpec((rows_per_step, m), lambda i: (i, 0)),
        ),
        compiler_params=pltpu.CompilerParams(
            dimension_semantics=("parallel",),
            vmem_limit_bytes=vmem_limit,
        ),
    )(x, wqkv, wo_t)
    return out.reshape(B, T, S, m)


def ref_forward(q_in, wq, wk, wv, wo, H):
    """Pure-JAX reference replicating the PyTorch forward pass (f32 throughout)."""
    B, T, m, S = q_in.shape
    dh = m // H
    x = jnp.transpose(q_in, (0, 1, 3, 2))                     # (B,T,S,m)
    lin = lambda a, w: jnp.einsum('btsm,nm->btsn', a, w)      # nn.Linear (bias=False)
    query, key, value = lin(x, wq), lin(x, wk), lin(x, wv)
    split = lambda a: jnp.transpose(a.reshape(B, T, S, H, dh), (0, 1, 3, 2, 4))
    qh, kh, vh = split(query), split(key), split(value)       # (B,T,H,S,dh)
    scores = jnp.einsum('bthqd,bthkd->bthqk', qh, kh) / math.sqrt(dh)
    p = jax.nn.softmax(scores, axis=-1)
    o = jnp.einsum('bthqk,bthkd->bthqd', p, vh)
    o = jnp.transpose(o, (0, 1, 3, 2, 4)).reshape(B, T, S, m)
    return jnp.einsum('btsm,nm->btsn', o, wo)


if __name__ == "__main__":
    B, T, m, S, H = 2, 2, 32, 16, 4   # small shapes consistent with the module

    key = jax.random.PRNGKey(0)
    k_x, k_q, k_k, k_v, k_o = jax.random.split(key, 5)
    q_in = jax.random.normal(k_x, (B, T, m, S), dtype=jnp.float32)
    # deterministic synthetic weights, PyTorch Linear layout (out_features, in_features)
    bound = 1.0 / math.sqrt(m)
    wq = jax.random.uniform(k_q, (m, m), jnp.float32, -bound, bound)
    wk = jax.random.uniform(k_k, (m, m), jnp.float32, -bound, bound)
    wv = jax.random.uniform(k_v, (m, m), jnp.float32, -bound, bound)
    wo = jax.random.uniform(k_o, (m, m), jnp.float32, -bound, bound)

    fwd = jax.jit(visual_spatial_mha, static_argnames=("H", "mxu_dtype"))
    out = jax.block_until_ready(fwd(q_in, wq, wk, wv, wo, H=H))

    ref = ref_forward(q_in, wq, wk, wv, wo, H)
    assert out.shape == (B, T, S, m)
    # bf16 MXU operands + approx-reciprocal softmax -> modest absolute tolerance.
    err = float(jnp.max(jnp.abs(out - ref)))
    assert err < 5e-2, f"mismatch vs reference: max abs err {err}"
    print("KERNEL_OK")
</pallas_src>

<mosaic_0001>
module attributes {stable_mosaic.version = 11 : i64} {
  func.func @_vs_mha_kernel(%arg0: i32, %arg1: memref<16x32xf32, #tpu.memory_space<vmem>>, %arg2: memref<32x96xbf16, #tpu.memory_space<vmem>>, %arg3: memref<32x32xbf16, #tpu.memory_space<vmem>>, %arg4: memref<16x32xf32, #tpu.memory_space<vmem>>) attributes {dimension_semantics = [#tpu.dimension_semantics<parallel>], iteration_bounds = array<i64: 4>, scalar_prefetch = 0 : i64, scratch_operands = 0 : i64, tpu.core_type = #tpu.core_type<tc>, window_params = [{transform_indices = @transform_0, window_bounds = array<i64: 16, 32>}, {pipeline_mode = #tpu.pipeline_mode<synchronous>, transform_indices = @transform_1, window_bounds = array<i64: 32, 96>}, {pipeline_mode = #tpu.pipeline_mode<synchronous>, transform_indices = @transform_2, window_bounds = array<i64: 32, 32>}, {transform_indices = @transform_3, window_bounds = array<i64: 16, 32>}]} {
    %c0 = arith.constant 0 : index
    %c0_0 = arith.constant 0 : index
    %0 = vector.load %arg1[%c0, %c0_0] : memref<16x32xf32, #tpu.memory_space<vmem>>, vector<16x32xf32>
    %1 = arith.truncf %0 : vector<16x32xf32> to vector<16x32xbf16>
    %c0_1 = arith.constant 0 : index
    %c0_2 = arith.constant 0 : index
    %2 = vector.load %arg2[%c0_1, %c0_2] : memref<32x96xbf16, #tpu.memory_space<vmem>>, vector<32x96xbf16>
    %cst = arith.constant dense<0.000000e+00> : vector<16x96xf32>
    %3 = tpu.matmul %1, %2, %cst {dimension_numbers = #tpu.dot_dimension_numbers<[1], [0], [0], [1], [0, 0, 1, 1], [], []>} : vector<16x32xbf16>, vector<32x96xbf16>, vector<16x96xf32> -> vector<16x96xf32>
    %4 = vector.extract_strided_slice %3 {offsets = [0, 0], sizes = [16, 32], strides = [1, 1]} : vector<16x96xf32> to vector<16x32xf32>
    %5 = vector.extract_strided_slice %3 {offsets = [0, 32], sizes = [16, 32], strides = [1, 1]} : vector<16x96xf32> to vector<16x32xf32>
    %6 = vector.extract_strided_slice %3 {offsets = [0, 64], sizes = [16, 32], strides = [1, 1]} : vector<16x96xf32> to vector<16x32xf32>
    %7 = vector.extract_strided_slice %4 {offsets = [0, 0], sizes = [16, 8], strides = [1, 1]} : vector<16x32xf32> to vector<16x8xf32>
    %8 = vector.shape_cast %7 : vector<16x8xf32> to vector<1x16x8xf32>
    %9 = vector.extract_strided_slice %4 {offsets = [0, 8], sizes = [16, 8], strides = [1, 1]} : vector<16x32xf32> to vector<16x8xf32>
    %10 = vector.shape_cast %9 : vector<16x8xf32> to vector<1x16x8xf32>
    %11 = vector.extract_strided_slice %4 {offsets = [0, 16], sizes = [16, 8], strides = [1, 1]} : vector<16x32xf32> to vector<16x8xf32>
    %12 = vector.shape_cast %11 : vector<16x8xf32> to vector<1x16x8xf32>
    %13 = vector.extract_strided_slice %4 {offsets = [0, 24], sizes = [16, 8], strides = [1, 1]} : vector<16x32xf32> to vector<16x8xf32>
    %14 = vector.shape_cast %13 : vector<16x8xf32> to vector<1x16x8xf32>
    %15 = tpu.concatenate %8, %10, %12, %14 in 0 : vector<1x16x8xf32>, vector<1x16x8xf32>, vector<1x16x8xf32>, vector<1x16x8xf32> -> vector<4x16x8xf32>
    %16 = arith.truncf %15 : vector<4x16x8xf32> to vector<4x16x8xbf16>
    %17 = vector.extract_strided_slice %5 {offsets = [0, 0], sizes = [16, 8], strides = [1, 1]} : vector<16x32xf32> to vector<16x8xf32>
    %18 = vector.shape_cast %17 : vector<16x8xf32> to vector<1x16x8xf32>
    %19 = vector.extract_strided_slice %5 {offsets = [0, 8], sizes = [16, 8], strides = [1, 1]} : vector<16x32xf32> to vector<16x8xf32>
    %20 = vector.shape_cast %19 : vector<16x8xf32> to vector<1x16x8xf32>
    %21 = vector.extract_strided_slice %5 {offsets = [0, 16], sizes = [16, 8], strides = [1, 1]} : vector<16x32xf32> to vector<16x8xf32>
    %22 = vector.shape_cast %21 : vector<16x8xf32> to vector<1x16x8xf32>
    %23 = vector.extract_strided_slice %5 {offsets = [0, 24], sizes = [16, 8], strides = [1, 1]} : vector<16x32xf32> to vector<16x8xf32>
    %24 = vector.shape_cast %23 : vector<16x8xf32> to vector<1x16x8xf32>
    %25 = tpu.concatenate %18, %20, %22, %24 in 0 : vector<1x16x8xf32>, vector<1x16x8xf32>, vector<1x16x8xf32>, vector<1x16x8xf32> -> vector<4x16x8xf32>
    %26 = arith.truncf %25 : vector<4x16x8xf32> to vector<4x16x8xbf16>
    %27 = vector.extract_strided_slice %6 {offsets = [0, 0], sizes = [16, 8], strides = [1, 1]} : vector<16x32xf32> to vector<16x8xf32>
    %28 = vector.shape_cast %27 : vector<16x8xf32> to vector<1x16x8xf32>
    %29 = vector.extract_strided_slice %6 {offsets = [0, 8], sizes = [16, 8], strides = [1, 1]} : vector<16x32xf32> to vector<16x8xf32>
    %30 = vector.shape_cast %29 : vector<16x8xf32> to vector<1x16x8xf32>
    %31 = vector.extract_strided_slice %6 {offsets = [0, 16], sizes = [16, 8], strides = [1, 1]} : vector<16x32xf32> to vector<16x8xf32>
    %32 = vector.shape_cast %31 : vector<16x8xf32> to vector<1x16x8xf32>
    %33 = vector.extract_strided_slice %6 {offsets = [0, 24], sizes = [16, 8], strides = [1, 1]} : vector<16x32xf32> to vector<16x8xf32>
    %34 = vector.shape_cast %33 : vector<16x8xf32> to vector<1x16x8xf32>
    %35 = tpu.concatenate %28, %30, %32, %34 in 0 : vector<1x16x8xf32>, vector<1x16x8xf32>, vector<1x16x8xf32>, vector<1x16x8xf32> -> vector<4x16x8xf32>
    %36 = arith.truncf %35 : vector<4x16x8xf32> to vector<4x16x8xbf16>
    "tpu.trace_start"() <{level = 10 : i32, message = "zqd,zkd->zqk"}> : () -> ()
    %cst_3 = arith.constant dense<0.000000e+00> : vector<4x16x16xf32>
    %37 = tpu.matmul %16, %26, %cst_3 {dimension_numbers = #tpu.dot_dimension_numbers<[2], [2], [1], [1], [0, 0, 0, 1, 1, 1], [0], [0]>} : vector<4x16x8xbf16>, vector<4x16x8xbf16>, vector<4x16x16xf32> -> vector<4x16x16xf32>
    "tpu.trace_stop"() : () -> ()
    %cst_4 = arith.constant dense<0xFF800000> : vector<4x16xf32>
    %38 = vector.multi_reduction <maximumf>, %37, %cst_4 [2] : vector<4x16x16xf32> to vector<4x16xf32>
    %39 = vector.shape_cast %38 : vector<4x16xf32> to vector<4x16x1xf32>
    %40 = vector.broadcast %39 : vector<4x16x1xf32> to vector<4x16x16xf32>
    %41 = arith.subf %37, %40 : vector<4x16x16xf32>
    %42 = math.exp %41 : vector<4x16x16xf32>
    %cst_5 = arith.constant dense<0.000000e+00> : vector<4x16xf32>
    %43 = vector.multi_reduction <add>, %42, %cst_5 [2] : vector<4x16x16xf32> to vector<4x16xf32>
    %44 = vector.shape_cast %43 : vector<4x16xf32> to vector<4x16x1xf32>
    %45 = tpu.reciprocal %44 {approx = true} : vector<4x16x1xf32> -> vector<4x16x1xf32>
    %46 = vector.broadcast %45 : vector<4x16x1xf32> to vector<4x16x16xf32>
    %47 = arith.mulf %42, %46 : vector<4x16x16xf32>
    %48 = arith.truncf %47 : vector<4x16x16xf32> to vector<4x16x16xbf16>
    "tpu.trace_start"() <{level = 10 : i32, message = "zqk,zkd->zqd"}> : () -> ()
    %cst_6 = arith.constant dense<0.000000e+00> : vector<4x16x8xf32>
    %49 = tpu.matmul %48, %36, %cst_6 {dimension_numbers = #tpu.dot_dimension_numbers<[2], [1], [1], [2], [0, 0, 0, 1, 1, 2], [0], [0]>} : vector<4x16x16xbf16>, vector<4x16x8xbf16>, vector<4x16x8xf32> -> vector<4x16x8xf32>
    "tpu.trace_stop"() : () -> ()
    %50 = vector.extract_strided_slice %49 {offsets = [0, 0, 0], sizes = [1, 16, 8], strides = [1, 1, 1]} : vector<4x16x8xf32> to vector<1x16x8xf32>
    %51 = vector.shape_cast %50 : vector<1x16x8xf32> to vector<16x8xf32>
    %52 = vector.extract_strided_slice %49 {offsets = [1, 0, 0], sizes = [1, 16, 8], strides = [1, 1, 1]} : vector<4x16x8xf32> to vector<1x16x8xf32>
    %53 = vector.shape_cast %52 : vector<1x16x8xf32> to vector<16x8xf32>
    %54 = vector.extract_strided_slice %49 {offsets = [2, 0, 0], sizes = [1, 16, 8], strides = [1, 1, 1]} : vector<4x16x8xf32> to vector<1x16x8xf32>
    %55 = vector.shape_cast %54 : vector<1x16x8xf32> to vector<16x8xf32>
    %56 = vector.extract_strided_slice %49 {offsets = [3, 0, 0], sizes = [1, 16, 8], strides = [1, 1, 1]} : vector<4x16x8xf32> to vector<1x16x8xf32>
    %57 = vector.shape_cast %56 : vector<1x16x8xf32> to vector<16x8xf32>
    %58 = tpu.concatenate %51, %53, %55, %57 in 1 : vector<16x8xf32>, vector<16x8xf32>, vector<16x8xf32>, vector<16x8xf32> -> vector<16x32xf32>
    %59 = arith.truncf %58 : vector<16x32xf32> to vector<16x32xbf16>
    %c0_7 = arith.constant 0 : index
    %c0_8 = arith.constant 0 : index
    %60 = vector.load %arg3[%c0_7, %c0_8] : memref<32x32xbf16, #tpu.memory_space<vmem>>, vector<32x32xbf16>
    %cst_9 = arith.constant dense<0.000000e+00> : vector<16x32xf32>
    %61 = tpu.matmul %59, %60, %cst_9 {dimension_numbers = #tpu.dot_dimension_numbers<[1], [0], [0], [1], [0, 0, 1, 1], [], []>} : vector<16x32xbf16>, vector<32x32xbf16>, vector<16x32xf32> -> vector<16x32xf32>
    %c0_10 = arith.constant 0 : index
    %c0_11 = arith.constant 0 : index
    %62 = vector.load %arg4[%c0_10, %c0_11] : memref<16x32xf32, #tpu.memory_space<vmem>>, vector<16x32xf32>
    tpu.vector_store %arg4[%c0_10, %c0_11], %61 {strides = array<i32>} : memref<16x32xf32, #tpu.memory_space<vmem>>, vector<16x32xf32>,
    return
  }
  func.func @transform_0(%arg0: i32) -> (i32, i32) {
    %c0_i32 = arith.constant 0 : i32
    %c0_i32_0 = arith.constant 0 : i32
    return %arg0, %c0_i32 : i32, i32
  }
  func.func @transform_1(%arg0: i32) -> (i32, i32) {
    %c0_i32 = arith.constant 0 : i32
    %c0_i32_0 = arith.constant 0 : i32
    %c0_i32_1 = arith.constant 0 : i32
    return %c0_i32, %c0_i32_0 : i32, i32
  }
  func.func @transform_2(%arg0: i32) -> (i32, i32) {
    %c0_i32 = arith.constant 0 : i32
    %c0_i32_0 = arith.constant 0 : i32
    %c0_i32_1 = arith.constant 0 : i32
    return %c0_i32, %c0_i32_0 : i32, i32
  }
  func.func @transform_3(%arg0: i32) -> (i32, i32) {
    %c0_i32 = arith.constant 0 : i32
    %c0_i32_0 = arith.constant 0 : i32
    return %arg0, %c0_i32 : i32, i32
  }
}

</mosaic_0001>

<llo_original>
// kernel: visual_spatial_mha.1
$region0: #{visual_spatial_mha.1}
  #allocation0 [shape = 'u32[]', space=smem, size = 0x4, offset = 0x4, fixed_abs, tag = 'smem constant byte address 0x4 - core index']
  #allocation1 [shape = 'u32[144,128]{1,0:T(1,128)}', space=vmem, size = 0x12000, scoped, tag = 'internal scratch']
  %s0 = inlined_call_operand.vmem [shape: f32[64,32], index: 0, kind: input, shape index: {}]
  %s1 = inlined_call_operand.vmem [shape: bf16[32,96], index: 1, kind: input, shape index: {}]
  %s2 = inlined_call_operand.vmem [shape: bf16[32,32], index: 2, kind: input, shape index: {}]
  %s3 = inlined_call_operand.hbm [shape: f32[64,32], index: 3, kind: output, shape index: {}]
  %s4 = sld [smem:[#allocation0]]
  $region45: #{visual_spatial_mha.1} parent=0
    _
  %s6 = ssub.s32 1, %s4
  %s7 = scalar_select 0, %s6, %s4
  $region1: #{visual_spatial_mha.1} parent=0
    #allocation2 [shape = 'u8[16384]{0}', space=vmem, size = 0x4000, scoped, tag = 'output window, operand 0']
    #allocation3 [shape = 's32[2]{0}', space=sflag, size = 0x8, scoped, tag = 'scoped memory for visual_spatial_mha.1']
    %8 = vsyncpa [#allocation3], 0
    %s9 = scalar_lea.sflag [#allocation3], 1
    %10 = vsyncpa %s9, 0
    loop: start=0, step=1, limit=6
    $region2: #{visual_spatial_mha.1} parent=1 // loop_pre_header
      _
    $region3: #{visual_spatial_mha.1} parent=1 // loop_header
      %s12 = sphi 0, %s16
      %p13 = scmp.ge.s32.totalorder %s12, 6
      %s22 = sphi 0, %s24
      %s25 = sphi 0, %s22
      %s26 = sphi 0, %s25
      %s42 = sphi 0, %s26
      %s46 = sphi 0, %s46
      %s48 = sphi 0, %s46
      %s49 = sphi 0, %s48
      %s63 = sphi 0, %s49
      %s67 = sphi 0, %s67
      %s69 = sphi 0, %s67
      %s70 = sphi 0, %s69
      %s84 = sphi 0, %s70
      %s90 = sphi 0, %s92
      %s93 = sphi 0, %s90
      %s94 = sphi 0, %s93
      %s110 = sphi 0, %s94
    $region4: #{visual_spatial_mha.1} parent=1 // loop_header_branch
      %15 = sbr.rel (%p13) target = $region8
    $region5: #{visual_spatial_mha.1} parent=1 // loop_body
      %s17 = ssub.s32 %s12, 1
      %s18 = ssub.s32 %s12, 2
      %s19 = sadd.s32 %s12, 1
      %s20 = ssub.s32 %s12, %s19
      %p21 = scmp.eq.s32.totalorder %s20, 0
      %s23 = sadd.s32 %s22, 1
      %s24 = scalar_select %p21, %s22, %s23
      %p27 = pneg %p21
      %p28 = scmp.eq.s32.totalorder %s12, 3
      %p29 = por %p27, %p28
      %p30 = scmp.ne.s32.totalorder %s22, %s25
      %p31 = scmp.eq.s32.totalorder %s12, 0
      %p32 = por %p30, %p31
      %p33 = scmp.ne.s32.totalorder %s22, %s25
      %p34 = scmp.eq.s32.totalorder %s17, 3
      %p35 = por %p33, %p34
      %p36 = scmp.ne.s32.totalorder %s25, %s26
      %p37 = scmp.eq.s32.totalorder %s17, 0
      %p38 = por %p36, %p37
      %p39 = scmp.ne.s32.totalorder %s25, %s26
      %p40 = scmp.eq.s32.totalorder %s18, 3
      %p41 = por %p39, %p40
      %p43 = scmp.ne.s32.totalorder %s26, %s42
      %p44 = scmp.eq.s32.totalorder %s18, 0
      %p45 = por %p43, %p44
      %s47 = sadd.s32 %s46, 1
      %p50 = scmp.eq.s32.totalorder %s12, 3
      %p51 = scmp.ne.s32.totalorder %s46, %s48
      %p52 = scmp.eq.s32.totalorder %s12, 0
      %p53 = por %p51, %p52
      %p54 = scmp.ne.s32.totalorder %s46, %s48
      %p55 = scmp.eq.s32.totalorder %s17, 3
      %p56 = por %p54, %p55
      %p57 = scmp.ne.s32.totalorder %s48, %s49
      %p58 = scmp.eq.s32.totalorder %s17, 0
      %p59 = por %p57, %p58
      %p60 = scmp.ne.s32.totalorder %s48, %s49
      %p61 = scmp.eq.s32.totalorder %s18, 3
      %p62 = por %p60, %p61
      %p64 = scmp.ne.s32.totalorder %s49, %s63
      %p65 = scmp.eq.s32.totalorder %s18, 0
      %p66 = por %p64, %p65
      %s68 = sadd.s32 %s67, 1
      %p71 = scmp.eq.s32.totalorder %s12, 3
      %p72 = scmp.ne.s32.totalorder %s67, %s69
      %p73 = scmp.eq.s32.totalorder %s12, 0
      %p74 = por %p72, %p73
      %p75 = scmp.ne.s32.totalorder %s67, %s69
      %p76 = scmp.eq.s32.totalorder %s17, 3
      %p77 = por %p75, %p76
      %p78 = scmp.ne.s32.totalorder %s69, %s70
      %p79 = scmp.eq.s32.totalorder %s17, 0
      %p80 = por %p78, %p79
      %p81 = scmp.ne.s32.totalorder %s69, %s70
      %p82 = scmp.eq.s32.totalorder %s18, 3
      %p83 = por %p81, %p82
      %p85 = scmp.ne.s32.totalorder %s70, %s84
      %p86 = scmp.eq.s32.totalorder %s18, 0
      %p87 = por %p85, %p86
      %s88 = ssub.s32 %s12, %s19
      %p89 = scmp.eq.s32.totalorder %s88, 0
      %s91 = sadd.s32 %s90, 1
      %s92 = scalar_select %p89, %s90, %s91
      %p95 = pneg %p89
      %p96 = scmp.eq.s32.totalorder %s12, 3
      %p97 = por %p95, %p96
      %p98 = scmp.ne.s32.totalorder %s90, %s93
      %p99 = scmp.eq.s32.totalorder %s12, 0
      %p100 = por %p98, %p99
      %p101 = scmp.ne.s32.totalorder %s90, %s93
      %p102 = scmp.eq.s32.totalorder %s17, 3
      %p103 = por %p101, %p102
      %p104 = scmp.ne.s32.totalorder %s93, %s94
      %p105 = scmp.eq.s32.totalorder %s17, 0
      %p106 = por %p104, %p105
      %p107 = scmp.ne.s32.totalorder %s93, %s94
      %p108 = scmp.eq.s32.totalorder %s18, 3
      %p109 = por %p107, %p108
      %p111 = scmp.ne.s32.totalorder %s94, %s110
      %p112 = scmp.eq.s32.totalorder %s18, 0
      %p113 = por %p111, %p112
      %p114 = scmp.le.s32.totalorder 1, %s12
      %p115 = scmp.lt.s32.totalorder %s12, 5
      %p116 = pnand %p114, %p115
      %p117 = pneg %p116
      // Predicated region
      $region9: #{visual_spatial_mha.1} parent=5 // pred_check
        _
      $region10: #{visual_spatial_mha.1} parent=5 // pred_check_branch
        %119 = sbr.rel (%p116) target = $region12
      $region11: #{visual_spatial_mha.1} parent=5 // pred_region
        %s120 = ssub.s32 %s12, 1
        // Predicated region
        $region13: #{visual_spatial_mha.1} parent=11 // pred_check
          %p121 = pneg %p59
        $region14: #{visual_spatial_mha.1} parent=11 // pred_check_branch
          %123 = sbr.rel (%p121) target = $region16
        $region15: #{visual_spatial_mha.1} parent=11 // pred_region
          _
        $region16: #{visual_spatial_mha.1} parent=11 // pred_fallthru
          _
        // Predicated region
        $region17: #{visual_spatial_mha.1} parent=11 // pred_check
          %p124 = pneg %p80
        $region18: #{visual_spatial_mha.1} parent=11 // pred_check_branch
          %126 = sbr.rel (%p124) target = $region20
        $region19: #{visual_spatial_mha.1} parent=11 // pred_region
          _
        $region20: #{visual_spatial_mha.1} parent=11 // pred_fallthru
          _
      $region12: #{visual_spatial_mha.1} parent=5 // pred_fallthru
        _
      %p127 = scmp.lt.s32.totalorder %s12, 4
      // Predicated region
      $region21: #{visual_spatial_mha.1} parent=5 // pred_check
        %p128 = pneg %p127
      $region22: #{visual_spatial_mha.1} parent=5 // pred_check_branch
        %130 = sbr.rel (%p128) target = $region24
      $region23: #{visual_spatial_mha.1} parent=5 // pred_region
        // Predicated region
        $region25: #{visual_spatial_mha.1} parent=23 // pred_check
          %p131 = pneg %p32
        $region26: #{visual_spatial_mha.1} parent=23 // pred_check_branch
          %133 = sbr.rel (%p131) target = $region28
        $region27: #{visual_spatial_mha.1} parent=23 // pred_region
          %s134 = smul.u32 2, %s12
          %p135 = scmp.lt.s32.totalorder %s134, 7
          %s136 = scalar_select %p135, %s134, 7
          %s137 = smul.addr %s136, 8
          %s138 = scalar_lea.vmem %s0, %s137
          %s139 = smul.u32 2, %s12
        $region28: #{visual_spatial_mha.1} parent=23 // pred_fallthru
          _
      $region24: #{visual_spatial_mha.1} parent=5 // pred_fallthru
        _
      %p140 = scmp.le.s32.totalorder 1, %s12
      %p141 = scmp.lt.s32.totalorder %s12, 5
      %p142 = pnand %p140, %p141
      %p143 = pneg %p142
      // Predicated region
      $region29: #{visual_spatial_mha.1} parent=5 // pred_check
        _
      $region30: #{visual_spatial_mha.1} parent=5 // pred_check_branch
        %145 = sbr.rel (%p142) target = $region32
      $region31: #{visual_spatial_mha.1} parent=5 // pred_region
        %s146 = ssub.s32 %s12, 1
        %s147 = smul.u32 2, %s17
        %p148 = scmp.lt.s32.totalorder %s147, 7
        %s149 = scalar_select %p148, %s147, 7
        %s150 = smul.addr %s149, 8
        %s151 = scalar_lea.vmem %s0, %s150
        %p152 = pneg %p38
        %p153 = pneg %p35
        %p154 = pneg %p59
        %p155 = pneg %p56
        %p156 = pneg %p80
        %p157 = pneg %p77
        %p158 = pneg %p106
        %p159 = pneg %p103
        %s160 = sand.u32 %s93, 1
        %s161 = scalar_lea.sflag [#allocation3], %s160
        %s162 = sand.u32 %s93, 1
        %s163 = smul.addr %s162, 16
        %s164 = scalar_lea.vmem [#allocation2], %s163
        %s165 = smul.u32 2, %s17
        %p166 = scmp.lt.s32.totalorder %s165, 7
        %s167 = scalar_select %p166, %s165, 7
        %s168 = smul.addr %s167, 8
        %s169 = scalar_lea.vmem %s0, %s168
        %s170 = smul.u32 2, %s17
        %s171 = smul.u32 2, %s17
        %v173 = vld [vmem:[%s169] sm:$0xff]
        %v174 = vld [vmem:[%s169 + $0x8] sm:$0xff]
        %v175 = vpack.c.bf16 %v174, %v173
        %v176 = vld [vmem:[%s1] sm:$0xf]
        %v177 = vld [vmem:[%s1 + $0x4] sm:$0xf]
        %v178 = vld [vmem:[%s1 + $0x8] sm:$0xf]
        %v179 = vld [vmem:[%s1 + $0xc] sm:$0xf]
        %v184 = vunpack.c.l.b16 %v176
        %v185 = vunpack.c.l.b16 %v177
        %v186 = vunpack.c.l.b16 %v178
        %v187 = vunpack.c.l.b16 %v179
        %v188 = vpack.c.b16 %v185, %v184
        %v189 = vpack.c.b16 %v187, %v186
        %vm192 = vcmask 261120
        %v194 = vsel %vm192, %v175, 0
        %196 = vmatprep.subr.bf16.mxu0 0
        %197 = vmatpush1.bf16.msra.mxu0 0
        %198 = vmatprep.subr.bf16.mxu0 0
        %199 = vmatpush1.bf16.msra.mxu0 0
        %200 = vmatprep.subr.bf16.mxu0 0
        %201 = vmatpush1.bf16.msra.mxu0 0
        %202 = vmatprep.subr.bf16.mxu0 0
        %203 = vmatpush1.bf16.msra.mxu0 0
        %204 = vmatprep.subr.bf16.mxu0 0
        %205 = vmatpush1.bf16.msra.mxu0 0
        %206 = vmatprep.subr.bf16.mxu0 0
        %207 = vmatpush1.bf16.msra.mxu0 0
        %208 = vmatprep.subr.bf16.mxu0 0
        %209 = vmatpush1.bf16.msra.mxu0 %v189
        %210 = vmatprep.subr.bf16.mxu0 0
        %211 = vmatpush1.bf16.msra.mxu0 %v188
        %212 = vmatprep.subr.bf16.mxu0 0
        %213 = vmatpush2.bf16.msra.mxu0 0
        %214 = vmatprep.subr.bf16.mxu0 0
        %215 = vmatpush2.bf16.msra.mxu0 0
        %216 = vmatprep.subr.bf16.mxu0 0
        %217 = vmatpush2.bf16.msra.mxu0 0
        %218 = vmatprep.subr.bf16.mxu0 0
        %219 = vmatpush2.bf16.msra.mxu0 0
        %220 = vmatprep.subr.bf16.mxu0 0
        %221 = vmatpush2.bf16.msra.mxu0 0
        %222 = vmatprep.subr.bf16.mxu0 0
        %223 = vmatpush2.bf16.msra.mxu0 0
        %224 = vmatprep.subr.bf16.mxu0 0
        %225 = vmatpush2.bf16.msra.mxu0 0
        %226 = vmatprep.subr.bf16.mxu0 0
        %227 = vmatpush2.bf16.msra.mxu0 0
        %228 = vmatprep.mubr.bf16.mxu0 0
        %229 = vmatmul.mubr.bf16.gmra.mxu0 %v194
        %v230 = vpop.f32.mrf.mxu0
        %v231 = vadd.f32 0.0, %v230
        %v232 = vpop.f32.mrf.mxu0
        %v233 = vpop.f32.mrf.mxu0
        %v234 = vadd.f32 0.0, %v233
        %v235 = vpop.f32.mrf.mxu0
        %236 = vdwg.mxu0
        %239 = vrot.lane.b32.xlu0 %v231, 120
        %v240 = vpop.permute.xlu0 %239
        %241 = vrot.lane.b32.xlu0 %v234, 120
        %v242 = vpop.permute.xlu0 %241
        %245 = vrot.lane.b32.xlu0 %v231, 112
        %v246 = vpop.permute.xlu0 %245
        %247 = vrot.lane.b32.xlu0 %v234, 112
        %v248 = vpop.permute.xlu0 %247
        %251 = vrot.lane.b32.xlu0 %v231, 104
        %v252 = vpop.permute.xlu0 %251
        %253 = vrot.lane.b32.xlu0 %v234, 104
        %v254 = vpop.permute.xlu0 %253
        %v257 = vpack.c.bf16 %v234, %v231
        %v258 = vpack.c.bf16 %v242, %v240
        %v259 = vpack.c.bf16 %v248, %v246
        %v260 = vpack.c.bf16 %v254, %v252
        %262 = vrot.lane.b32.xlu0 %v257, 96
        %v263 = vpop.permute.xlu0 %262
        %vm264 = vcmask 64512
        %v266 = vsel %vm264, %v257, 0
        %v269 = vsel %vm264, %v263, 0
        %271 = vmatprep.subr.bf16.mxu0 0
        %272 = vmatpush1.bf16.xpose.msra.mxu0 0
        %273 = vmatprep.subr.bf16.mxu0 0
        %274 = vmatpush1.bf16.xpose.msra.mxu0 0
        %275 = vmatprep.subr.bf16.mxu0 0
        %276 = vmatpush1.bf16.xpose.msra.mxu0 0
        %277 = vmatprep.subr.bf16.mxu0 0
        %278 = vmatpush1.bf16.xpose.msra.mxu0 0
        %279 = vmatprep.subr.bf16.mxu0 0
        %280 = vmatpush1.bf16.xpose.msra.mxu0 0
        %281 = vmatprep.subr.bf16.mxu0 0
        %282 = vmatpush1.bf16.xpose.msra.mxu0 0
        %283 = vmatprep.subr.bf16.mxu0 0
        %284 = vmatpush1.bf16.xpose.msra.mxu0 0
        %285 = vmatprep.subr.bf16.mxu0 0
        %286 = vmatpush1.bf16.xpose.msra.mxu0 %v269
        %287 = vmatprep.subr.bf16.mxu0 0
        %288 = vmatpush2.bf16.xpose.msra.mxu0 0
        %289 = vmatprep.subr.bf16.mxu0 0
        %290 = vmatpush2.bf16.xpose.msra.mxu0 0
        %291 = vmatprep.subr.bf16.mxu0 0
        %292 = vmatpush2.bf16.xpose.msra.mxu0 0
        %293 = vmatprep.subr.bf16.mxu0 0
        %294 = vmatpush2.bf16.xpose.msra.mxu0 0
        %295 = vmatprep.subr.bf16.mxu0 0
        %296 = vmatpush2.bf16.xpose.msra.mxu0 0
        %297 = vmatprep.subr.bf16.mxu0 0
        %298 = vmatpush2.bf16.xpose.msra.mxu0 0
        %299 = vmatprep.subr.bf16.mxu0 0
        %300 = vmatpush2.bf16.xpose.msra.mxu0 0
        %301 = vmatprep.subr.bf16.mxu0 0
        %302 = vmatpush2.bf16.xpose.msra.mxu0 0
        %303 = vmatprep.mubr.bf16.mxu0 0
        %304 = vmatmul.mubr.bf16.gmra.mxu0 %v266
        %v305 = vpop.f32.mrf.mxu0
        %v306 = vadd.f32 0.0, %v305
        %v307 = vpop.f32.mrf.mxu0
        %v308 = vpop.f32.mrf.mxu0
        %v309 = vadd.f32 0.0, %v308
        %v310 = vpop.f32.mrf.mxu0
        %311 = vdwg.mxu0
        %313 = vrot.lane.b32.xlu0 %v258, 96
        %v314 = vpop.permute.xlu0 %313
        %v316 = vsel %vm264, %v258, 0
        %v319 = vsel %vm264, %v314, 0
        %321 = vmatprep.subr.bf16.mxu0 0
        %322 = vmatpush1.bf16.xpose.msra.mxu0 0
        %323 = vmatprep.subr.bf16.mxu0 0
        %324 = vmatpush1.bf16.xpose.msra.mxu0 0
        %325 = vmatprep.subr.bf16.mxu0 0
        %326 = vmatpush1.bf16.xpose.msra.mxu0 0
        %327 = vmatprep.subr.bf16.mxu0 0
        %328 = vmatpush1.bf16.xpose.msra.mxu0 0
        %329 = vmatprep.subr.bf16.mxu0 0
        %330 = vmatpush1.bf16.xpose.msra.mxu0 0
        %331 = vmatprep.subr.bf16.mxu0 0
        %332 = vmatpush1.bf16.xpose.msra.mxu0 0
        %333 = vmatprep.subr.bf16.mxu0 0
        %334 = vmatpush1.bf16.xpose.msra.mxu0 0
        %335 = vmatprep.subr.bf16.mxu0 0
        %336 = vmatpush1.bf16.xpose.msra.mxu0 %v319
        %337 = vmatprep.subr.bf16.mxu0 0
        %338 = vmatpush2.bf16.xpose.msra.mxu0 0
        %339 = vmatprep.subr.bf16.mxu0 0
        %340 = vmatpush2.bf16.xpose.msra.mxu0 0
        %341 = vmatprep.subr.bf16.mxu0 0
        %342 = vmatpush2.bf16.xpose.msra.mxu0 0
        %343 = vmatprep.subr.bf16.mxu0 0
        %344 = vmatpush2.bf16.xpose.msra.mxu0 0
        %345 = vmatprep.subr.bf16.mxu0 0
        %346 = vmatpush2.bf16.xpose.msra.mxu0 0
        %347 = vmatprep.subr.bf16.mxu0 0
        %348 = vmatpush2.bf16.xpose.msra.mxu0 0
        %349 = vmatprep.subr.bf16.mxu0 0
        %350 = vmatpush2.bf16.xpose.msra.mxu0 0
        %351 = vmatprep.subr.bf16.mxu0 0
        %352 = vmatpush2.bf16.xpose.msra.mxu0 0
        %353 = vmatprep.mubr.bf16.mxu0 0
        %354 = vmatmul.mubr.bf16.gmra.mxu0 %v316
        %v355 = vpop.f32.mrf.mxu0
        %v356 = vadd.f32 0.0, %v355
        %v357 = vpop.f32.mrf.mxu0
        %v358 = vpop.f32.mrf.mxu0
        %v359 = vadd.f32 0.0, %v358
        %v360 = vpop.f32.mrf.mxu0
        %361 = vdwg.mxu0
        %363 = vrot.lane.b32.xlu0 %v259, 96
        %v364 = vpop.permute.xlu0 %363
        %v366 = vsel %vm264, %v259, 0
        %v369 = vsel %vm264, %v364, 0
        %371 = vmatprep.subr.bf16.mxu0 0
        %372 = vmatpush1.bf16.xpose.msra.mxu0 0
        %373 = vmatprep.subr.bf16.mxu0 0
        %374 = vmatpush1.bf16.xpose.msra.mxu0 0
        %375 = vmatprep.subr.bf16.mxu0 0
        %376 = vmatpush1.bf16.xpose.msra.mxu0 0
        %377 = vmatprep.subr.bf16.mxu0 0
        %378 = vmatpush1.bf16.xpose.msra.mxu0 0
        %379 = vmatprep.subr.bf16.mxu0 0
        %380 = vmatpush1.bf16.xpose.msra.mxu0 0
        %381 = vmatprep.subr.bf16.mxu0 0
        %382 = vmatpush1.bf16.xpose.msra.mxu0 0
        %383 = vmatprep.subr.bf16.mxu0 0
        %384 = vmatpush1.bf16.xpose.msra.mxu0 0
        %385 = vmatprep.subr.bf16.mxu0 0
        %386 = vmatpush1.bf16.xpose.msra.mxu0 %v369
        %387 = vmatprep.subr.bf16.mxu0 0
        %388 = vmatpush2.bf16.xpose.msra.mxu0 0
        %389 = vmatprep.subr.bf16.mxu0 0
        %390 = vmatpush2.bf16.xpose.msra.mxu0 0
        %391 = vmatprep.subr.bf16.mxu0 0
        %392 = vmatpush2.bf16.xpose.msra.mxu0 0
        %393 = vmatprep.subr.bf16.mxu0 0
        %394 = vmatpush2.bf16.xpose.msra.mxu0 0
        %395 = vmatprep.subr.bf16.mxu0 0
        %396 = vmatpush2.bf16.xpose.msra.mxu0 0
        %397 = vmatprep.subr.bf16.mxu0 0
        %398 = vmatpush2.bf16.xpose.msra.mxu0 0
        %399 = vmatprep.subr.bf16.mxu0 0
        %400 = vmatpush2.bf16.xpose.msra.mxu0 0
        %401 = vmatprep.subr.bf16.mxu0 0
        %402 = vmatpush2.bf16.xpose.msra.mxu0 0
        %403 = vmatprep.mubr.bf16.mxu0 0
        %404 = vmatmul.mubr.bf16.gmra.mxu0 %v366
        %v405 = vpop.f32.mrf.mxu0
        %v406 = vadd.f32 0.0, %v405
        %v407 = vpop.f32.mrf.mxu0
        %v408 = vpop.f32.mrf.mxu0
        %v409 = vadd.f32 0.0, %v408
        %v410 = vpop.f32.mrf.mxu0
        %411 = vdwg.mxu0
        %413 = vrot.lane.b32.xlu0 %v260, 96
        %v414 = vpop.permute.xlu0 %413
        %v416 = vsel %vm264, %v260, 0
        %v419 = vsel %vm264, %v414, 0
        %421 = vmatprep.subr.bf16.mxu0 0
        %422 = vmatpush1.bf16.xpose.msra.mxu0 0
        %423 = vmatprep.subr.bf16.mxu0 0
        %424 = vmatpush1.bf16.xpose.msra.mxu0 0
        %425 = vmatprep.subr.bf16.mxu0 0
        %426 = vmatpush1.bf16.xpose.msra.mxu0 0
        %427 = vmatprep.subr.bf16.mxu0 0
        %428 = vmatpush1.bf16.xpose.msra.mxu0 0
        %429 = vmatprep.subr.bf16.mxu0 0
        %430 = vmatpush1.bf16.xpose.msra.mxu0 0
        %431 = vmatprep.subr.bf16.mxu0 0
        %432 = vmatpush1.bf16.xpose.msra.mxu0 0
        %433 = vmatprep.subr.bf16.mxu0 0
        %434 = vmatpush1.bf16.xpose.msra.mxu0 0
        %435 = vmatprep.subr.bf16.mxu0 0
        %436 = vmatpush1.bf16.xpose.msra.mxu0 %v419
        %437 = vmatprep.subr.bf16.mxu0 0
        %438 = vmatpush2.bf16.xpose.msra.mxu0 0
        %439 = vmatprep.subr.bf16.mxu0 0
        %440 = vmatpush2.bf16.xpose.msra.mxu0 0
        %441 = vmatprep.subr.bf16.mxu0 0
        %442 = vmatpush2.bf16.xpose.msra.mxu0 0
        %443 = vmatprep.subr.bf16.mxu0 0
        %444 = vmatpush2.bf16.xpose.msra.mxu0 0
        %445 = vmatprep.subr.bf16.mxu0 0
        %446 = vmatpush2.bf16.xpose.msra.mxu0 0
        %447 = vmatprep.subr.bf16.mxu0 0
        %448 = vmatpush2.bf16.xpose.msra.mxu0 0
        %449 = vmatprep.subr.bf16.mxu0 0
        %450 = vmatpush2.bf16.xpose.msra.mxu0 0
        %451 = vmatprep.subr.bf16.mxu0 0
        %452 = vmatpush2.bf16.xpose.msra.mxu0 0
        %453 = vmatprep.mubr.bf16.mxu0 0
        %454 = vmatmul.mubr.bf16.gmra.mxu0 %v416
        %v455 = vpop.f32.mrf.mxu0
        %v456 = vadd.f32 0.0, %v455
        %v457 = vpop.f32.mrf.mxu0
        %v458 = vpop.f32.mrf.mxu0
        %v459 = vadd.f32 0.0, %v458
        %v460 = vpop.f32.mrf.mxu0
        %461 = vdwg.mxu0
        %vm462 = vcmask 130048
        %v463 = vsel %vm462, %v306, -inf
        %464 = vmax.xlane.f32.xlu0 %v463
        %v465 = vpop.xlane.xlu0 %464
        %v466 = vsel %vm462, %v309, -inf
        %467 = vmax.xlane.f32.xlu0 %v466
        %v468 = vpop.xlane.xlu0 %467
        %v469 = vsel %vm462, %v356, -inf
        %470 = vmax.xlane.f32.xlu0 %v469
        %v471 = vpop.xlane.xlu0 %470
        %v472 = vsel %vm462, %v359, -inf
        %473 = vmax.xlane.f32.xlu0 %v472
        %v474 = vpop.xlane.xlu0 %473
        %v475 = vsel %vm462, %v406, -inf
        %476 = vmax.xlane.f32.xlu0 %v475
        %v477 = vpop.xlane.xlu0 %476
        %v478 = vsel %vm462, %v409, -inf
        %479 = vmax.xlane.f32.xlu0 %v478
        %v480 = vpop.xlane.xlu0 %479
        %v481 = vsel %vm462, %v456, -inf
        %482 = vmax.xlane.f32.xlu0 %v481
        %v483 = vpop.xlane.xlu0 %482
        %v484 = vsel %vm462, %v459, -inf
        %485 = vmax.xlane.f32.xlu0 %v484
        %v486 = vpop.xlane.xlu0 %485
        %v487 = vsub.f32 %v306, %v465
        %v488 = vsub.f32 %v309, %v468
        %v489 = vsub.f32 %v356, %v471
        %v490 = vsub.f32 %v359, %v474
        %v491 = vsub.f32 %v406, %v477
        %v492 = vsub.f32 %v409, %v480
        %v493 = vsub.f32 %v456, %v483
        %v494 = vsub.f32 %v459, %v486
        %v495 = vmul.f32 %v487, 1.442695
        %v496 = vpow.pop %v495
        %v497 = vmul.f32 %v488, 1.442695
        %v498 = vpow.pop %v497
        %v499 = vmul.f32 %v489, 1.442695
        %v500 = vpow.pop %v499
        %v501 = vmul.f32 %v490, 1.442695
        %v502 = vpow.pop %v501
        %v503 = vmul.f32 %v491, 1.442695
        %v504 = vpow.pop %v503
        %v505 = vmul.f32 %v492, 1.442695
        %v506 = vpow.pop %v505
        %v507 = vmul.f32 %v493, 1.442695
        %v508 = vpow.pop %v507
        %v509 = vmul.f32 %v494, 1.442695
        %v510 = vpow.pop %v509
        %v511 = vsel %vm462, %v496, 0.0
        %512 = vadd.xlane.f32.xlu0 %v511
        %v513 = vpop.xlane.xlu0 %512
        %v514 = vsel %vm462, %v498, 0.0
        %515 = vadd.xlane.f32.xlu0 %v514
        %v516 = vpop.xlane.xlu0 %515
        %v517 = vsel %vm462, %v500, 0.0
        %518 = vadd.xlane.f32.xlu0 %v517
        %v519 = vpop.xlane.xlu0 %518
        %v520 = vsel %vm462, %v502, 0.0
        %521 = vadd.xlane.f32.xlu0 %v520
        %v522 = vpop.xlane.xlu0 %521
        %v523 = vsel %vm462, %v504, 0.0
        %524 = vadd.xlane.f32.xlu0 %v523
        %v525 = vpop.xlane.xlu0 %524
        %v526 = vsel %vm462, %v506, 0.0
        %527 = vadd.xlane.f32.xlu0 %v526
        %v528 = vpop.xlane.xlu0 %527
        %v529 = vsel %vm462, %v508, 0.0
        %530 = vadd.xlane.f32.xlu0 %v529
        %v531 = vpop.xlane.xlu0 %530
        %v532 = vsel %vm462, %v510, 0.0
        %533 = vadd.xlane.f32.xlu0 %v532
        %v534 = vpop.xlane.xlu0 %533
        %v535 = vrcp.pop %v513
        %v536 = vrcp.pop %v516
        %v537 = vrcp.pop %v519
        %v538 = vrcp.pop %v522
        %v539 = vrcp.pop %v525
        %v540 = vrcp.pop %v528
        %v541 = vrcp.pop %v531
        %v542 = vrcp.pop %v534
        %v543 = vmul.f32 %v496, %v535
        %v544 = vmul.f32 %v498, %v536
        %v545 = vmul.f32 %v500, %v537
        %v546 = vmul.f32 %v502, %v538
        %v547 = vmul.f32 %v504, %v539
        %v548 = vmul.f32 %v506, %v540
        %v549 = vmul.f32 %v508, %v541
        %v550 = vmul.f32 %v510, %v542
        %v551 = vpack.c.bf16 %v544, %v543
        %v552 = vpack.c.bf16 %v546, %v545
        %v553 = vpack.c.bf16 %v548, %v547
        %v554 = vpack.c.bf16 %v550, %v549
        %555 = vrot.lane.b32.xlu0 %v257, 64
        %v556 = vpop.permute.xlu0 %555
        %v559 = vsel %vm462, %v551, 0
        %561 = vmatprep.subr.bf16.mxu0 0
        %562 = vmatpush1.bf16.msra.mxu0 0
        %563 = vmatprep.subr.bf16.mxu0 0
        %564 = vmatpush1.bf16.msra.mxu0 0
        %565 = vmatprep.subr.bf16.mxu0 0
        %566 = vmatpush1.bf16.msra.mxu0 0
        %567 = vmatprep.subr.bf16.mxu0 0
        %568 = vmatpush1.bf16.msra.mxu0 0
        %569 = vmatprep.subr.bf16.mxu0 0
        %570 = vmatpush1.bf16.msra.mxu0 0
        %571 = vmatprep.subr.bf16.mxu0 0
        %572 = vmatpush1.bf16.msra.mxu0 0
        %573 = vmatprep.subr.bf16.mxu0 0
        %574 = vmatpush1.bf16.msra.mxu0 0
        %575 = vmatprep.subr.bf16.mxu0 0
        %576 = vmatpush1.bf16.msra.mxu0 %v556
        %577 = vmatprep.subr.bf16.mxu0 0
        %578 = vmatpush2.bf16.msra.mxu0 0
        %579 = vmatprep.subr.bf16.mxu0 0
        %580 = vmatpush2.bf16.msra.mxu0 0
        %581 = vmatprep.subr.bf16.mxu0 0
        %582 = vmatpush2.bf16.msra.mxu0 0
        %583 = vmatprep.subr.bf16.mxu0 0
        %584 = vmatpush2.bf16.msra.mxu0 0
        %585 = vmatprep.subr.bf16.mxu0 0
        %586 = vmatpush2.bf16.msra.mxu0 0
        %587 = vmatprep.subr.bf16.mxu0 0
        %588 = vmatpush2.bf16.msra.mxu0 0
        %589 = vmatprep.subr.bf16.mxu0 0
        %590 = vmatpush2.bf16.msra.mxu0 0
        %591 = vmatprep.subr.bf16.mxu0 0
        %592 = vmatpush2.bf16.msra.mxu0 0
        %593 = vmatprep.mubr.bf16.mxu0 0
        %594 = vmatmul.mubr.bf16.gmra.mxu0 %v559
        %v595 = vpop.f32.mrf.mxu0
        %v596 = vadd.f32 0.0, %v595
        %v597 = vpop.f32.mrf.mxu0
        %v598 = vpop.f32.mrf.mxu0
        %v599 = vadd.f32 0.0, %v598
        %v600 = vpop.f32.mrf.mxu0
        %601 = vdwg.mxu0
        %602 = vrot.lane.b32.xlu0 %v258, 64
        %v603 = vpop.permute.xlu0 %602
        %v606 = vsel %vm462, %v552, 0
        %608 = vmatprep.subr.bf16.mxu0 0
        %609 = vmatpush1.bf16.msra.mxu0 0
        %610 = vmatprep.subr.bf16.mxu0 0
        %611 = vmatpush1.bf16.msra.mxu0 0
        %612 = vmatprep.subr.bf16.mxu0 0
        %613 = vmatpush1.bf16.msra.mxu0 0
        %614 = vmatprep.subr.bf16.mxu0 0
        %615 = vmatpush1.bf16.msra.mxu0 0
        %616 = vmatprep.subr.bf16.mxu0 0
        %617 = vmatpush1.bf16.msra.mxu0 0
        %618 = vmatprep.subr.bf16.mxu0 0
        %619 = vmatpush1.bf16.msra.mxu0 0
        %620 = vmatprep.subr.bf16.mxu0 0
        %621 = vmatpush1.bf16.msra.mxu0 0
        %622 = vmatprep.subr.bf16.mxu0 0
        %623 = vmatpush1.bf16.msra.mxu0 %v603
        %624 = vmatprep.subr.bf16.mxu0 0
        %625 = vmatpush2.bf16.msra.mxu0 0
        %626 = vmatprep.subr.bf16.mxu0 0
        %627 = vmatpush2.bf16.msra.mxu0 0
        %628 = vmatprep.subr.bf16.mxu0 0
        %629 = vmatpush2.bf16.msra.mxu0 0
        %630 = vmatprep.subr.bf16.mxu0 0
        %631 = vmatpush2.bf16.msra.mxu0 0
        %632 = vmatprep.subr.bf16.mxu0 0
        %633 = vmatpush2.bf16.msra.mxu0 0
        %634 = vmatprep.subr.bf16.mxu0 0
        %635 = vmatpush2.bf16.msra.mxu0 0
        %636 = vmatprep.subr.bf16.mxu0 0
        %637 = vmatpush2.bf16.msra.mxu0 0
        %638 = vmatprep.subr.bf16.mxu0 0
        %639 = vmatpush2.bf16.msra.mxu0 0
        %640 = vmatprep.mubr.bf16.mxu0 0
        %641 = vmatmul.mubr.bf16.gmra.mxu0 %v606
        %v642 = vpop.f32.mrf.mxu0
        %v643 = vadd.f32 0.0, %v642
        %v644 = vpop.f32.mrf.mxu0
        %v645 = vpop.f32.mrf.mxu0
        %v646 = vadd.f32 0.0, %v645
        %v647 = vpop.f32.mrf.mxu0
        %648 = vdwg.mxu0
        %649 = vrot.lane.b32.xlu0 %v259, 64
        %v650 = vpop.permute.xlu0 %649
        %v653 = vsel %vm462, %v553, 0
        %655 = vmatprep.subr.bf16.mxu0 0
        %656 = vmatpush1.bf16.msra.mxu0 0
        %657 = vmatprep.subr.bf16.mxu0 0
        %658 = vmatpush1.bf16.msra.mxu0 0
        %659 = vmatprep.subr.bf16.mxu0 0
        %660 = vmatpush1.bf16.msra.mxu0 0
        %661 = vmatprep.subr.bf16.mxu0 0
        %662 = vmatpush1.bf16.msra.mxu0 0
        %663 = vmatprep.subr.bf16.mxu0 0
        %664 = vmatpush1.bf16.msra.mxu0 0
        %665 = vmatprep.subr.bf16.mxu0 0
        %666 = vmatpush1.bf16.msra.mxu0 0
        %667 = vmatprep.subr.bf16.mxu0 0
        %668 = vmatpush1.bf16.msra.mxu0 0
        %669 = vmatprep.subr.bf16.mxu0 0
        %670 = vmatpush1.bf16.msra.mxu0 %v650
        %671 = vmatprep.subr.bf16.mxu0 0
        %672 = vmatpush2.bf16.msra.mxu0 0
        %673 = vmatprep.subr.bf16.mxu0 0
        %674 = vmatpush2.bf16.msra.mxu0 0
        %675 = vmatprep.subr.bf16.mxu0 0
        %676 = vmatpush2.bf16.msra.mxu0 0
        %677 = vmatprep.subr.bf16.mxu0 0
        %678 = vmatpush2.bf16.msra.mxu0 0
        %679 = vmatprep.subr.bf16.mxu0 0
        %680 = vmatpush2.bf16.msra.mxu0 0
        %681 = vmatprep.subr.bf16.mxu0 0
        %682 = vmatpush2.bf16.msra.mxu0 0
        %683 = vmatprep.subr.bf16.mxu0 0
        %684 = vmatpush2.bf16.msra.mxu0 0
        %685 = vmatprep.subr.bf16.mxu0 0
        %686 = vmatpush2.bf16.msra.mxu0 0
        %687 = vmatprep.mubr.bf16.mxu0 0
        %688 = vmatmul.mubr.bf16.gmra.mxu0 %v653
        %v689 = vpop.f32.mrf.mxu0
        %v690 = vadd.f32 0.0, %v689
        %v691 = vpop.f32.mrf.mxu0
        %v692 = vpop.f32.mrf.mxu0
        %v693 = vadd.f32 0.0, %v692
        %v694 = vpop.f32.mrf.mxu0
        %695 = vdwg.mxu0
        %696 = vrot.lane.b32.xlu0 %v260, 64
        %v697 = vpop.permute.xlu0 %696
        %v700 = vsel %vm462, %v554, 0
        %702 = vmatprep.subr.bf16.mxu0 0
        %703 = vmatpush1.bf16.msra.mxu0 0
        %704 = vmatprep.subr.bf16.mxu0 0
        %705 = vmatpush1.bf16.msra.mxu0 0
        %706 = vmatprep.subr.bf16.mxu0 0
        %707 = vmatpush1.bf16.msra.mxu0 0
        %708 = vmatprep.subr.bf16.mxu0 0
        %709 = vmatpush1.bf16.msra.mxu0 0
        %710 = vmatprep.subr.bf16.mxu0 0
        %711 = vmatpush1.bf16.msra.mxu0 0
        %712 = vmatprep.subr.bf16.mxu0 0
        %713 = vmatpush1.bf16.msra.mxu0 0
        %714 = vmatprep.subr.bf16.mxu0 0
        %715 = vmatpush1.bf16.msra.mxu0 0
        %716 = vmatprep.subr.bf16.mxu0 0
        %717 = vmatpush1.bf16.msra.mxu0 %v697
        %718 = vmatprep.subr.bf16.mxu0 0
        %719 = vmatpush2.bf16.msra.mxu0 0
        %720 = vmatprep.subr.bf16.mxu0 0
        %721 = vmatpush2.bf16.msra.mxu0 0
        %722 = vmatprep.subr.bf16.mxu0 0
        %723 = vmatpush2.bf16.msra.mxu0 0
        %724 = vmatprep.subr.bf16.mxu0 0
        %725 = vmatpush2.bf16.msra.mxu0 0
        %726 = vmatprep.subr.bf16.mxu0 0
        %727 = vmatpush2.bf16.msra.mxu0 0
        %728 = vmatprep.subr.bf16.mxu0 0
        %729 = vmatpush2.bf16.msra.mxu0 0
        %730 = vmatprep.subr.bf16.mxu0 0
        %731 = vmatpush2.bf16.msra.mxu0 0
        %732 = vmatprep.subr.bf16.mxu0 0
        %733 = vmatpush2.bf16.msra.mxu0 0
        %734 = vmatprep.mubr.bf16.mxu0 0
        %735 = vmatmul.mubr.bf16.gmra.mxu0 %v700
        %v736 = vpop.f32.mrf.mxu0
        %v737 = vadd.f32 0.0, %v736
        %v738 = vpop.f32.mrf.mxu0
        %v739 = vpop.f32.mrf.mxu0
        %v740 = vadd.f32 0.0, %v739
        %v741 = vpop.f32.mrf.mxu0
        %742 = vdwg.mxu0
        %745 = vrot.lane.b32.xlu0 %v643, 8
        %v746 = vpop.permute.xlu0 %745
        %747 = vrot.lane.b32.xlu0 %v646, 8
        %v748 = vpop.permute.xlu0 %747
        %753 = vrot.lane.b32.xlu0 %v690, 16
        %v754 = vpop.permute.xlu0 %753
        %755 = vrot.lane.b32.xlu0 %v693, 16
        %v756 = vpop.permute.xlu0 %755
        %761 = vrot.lane.b32.xlu0 %v737, 24
        %v762 = vpop.permute.xlu0 %761
        %763 = vrot.lane.b32.xlu0 %v740, 24
        %v764 = vpop.permute.xlu0 %763
        %v767 = vsel %vm264, %v596, %v746
        %v768 = vsel %vm264, %v599, %v748
        %v769 = vsel %vm462, %v767, %v754
        %v770 = vsel %vm462, %v768, %v756
        %vm771 = vcmask 195584
        %v772 = vsel %vm771, %v769, %v762
        %v773 = vsel %vm771, %v770, %v764
        %v774 = vpack.c.bf16 %v773, %v772
        %v775 = vld [vmem:[%s2] sm:$0xf]
        %v776 = vld [vmem:[%s2 + $0x4] sm:$0xf]
        %v777 = vld [vmem:[%s2 + $0x8] sm:$0xf]
        %v778 = vld [vmem:[%s2 + $0xc] sm:$0xf]
        %v783 = vunpack.c.l.b16 %v775
        %v784 = vunpack.c.l.b16 %v776
        %v785 = vunpack.c.l.b16 %v777
        %v786 = vunpack.c.l.b16 %v778
        %v787 = vpack.c.b16 %v784, %v783
        %v788 = vpack.c.b16 %v786, %v785
        %v792 = vsel %vm192, %v774, 0
        %794 = vmatprep.subr.bf16.mxu0 0
        %795 = vmatpush1.bf16.msra.mxu0 0
        %796 = vmatprep.subr.bf16.mxu0 0
        %797 = vmatpush1.bf16.msra.mxu0 0
        %798 = vmatprep.subr.bf16.mxu0 0
        %799 = vmatpush1.bf16.msra.mxu0 0
        %800 = vmatprep.subr.bf16.mxu0 0
        %801 = vmatpush1.bf16.msra.mxu0 0
        %802 = vmatprep.subr.bf16.mxu0 0
        %803 = vmatpush1.bf16.msra.mxu0 0
        %804 = vmatprep.subr.bf16.mxu0 0
        %805 = vmatpush1.bf16.msra.mxu0 0
        %806 = vmatprep.subr.bf16.mxu0 0
        %807 = vmatpush1.bf16.msra.mxu0 %v788
        %808 = vmatprep.subr.bf16.mxu0 0
        %809 = vmatpush1.bf16.msra.mxu0 %v787
        %810 = vmatprep.subr.bf16.mxu0 0
        %811 = vmatpush2.bf16.msra.mxu0 0
        %812 = vmatprep.subr.bf16.mxu0 0
        %813 = vmatpush2.bf16.msra.mxu0 0
        %814 = vmatprep.subr.bf16.mxu0 0
        %815 = vmatpush2.bf16.msra.mxu0 0
        %816 = vmatprep.subr.bf16.mxu0 0
        %817 = vmatpush2.bf16.msra.mxu0 0
        %818 = vmatprep.subr.bf16.mxu0 0
        %819 = vmatpush2.bf16.msra.mxu0 0
        %820 = vmatprep.subr.bf16.mxu0 0
        %821 = vmatpush2.bf16.msra.mxu0 0
        %822 = vmatprep.subr.bf16.mxu0 0
        %823 = vmatpush2.bf16.msra.mxu0 0
        %824 = vmatprep.subr.bf16.mxu0 0
        %825 = vmatpush2.bf16.msra.mxu0 0
        %826 = vmatprep.mubr.bf16.mxu0 0
        %827 = vmatmul.mubr.bf16.gmra.mxu0 %v792
        %v828 = vpop.f32.mrf.mxu0
        %v829 = vadd.f32 0.0, %v828
        %v830 = vpop.f32.mrf.mxu0
        %v831 = vpop.f32.mrf.mxu0
        %v832 = vadd.f32 0.0, %v831
        %v833 = vpop.f32.mrf.mxu0
        %834 = vdwg.mxu0
        %835 = vst.msk [vmem:[%s164] sm:$0xff] %vm192, %v829
        %836 = vst.msk [vmem:[%s164 + $0x8] sm:$0xff] %vm192, %v832
        %s837 = sand.u32 %s93, 1
        %s838 = scalar_lea.sflag [#allocation3], %s837
        %s839 = sand.u32 %s93, 1
        %s840 = smul.addr %s839, 16
        %s841 = scalar_lea.vmem [#allocation2], %s840
        // Predicated region
        $region33: #{visual_spatial_mha.1} parent=31 // pred_check
          %p842 = pneg %p103
        $region34: #{visual_spatial_mha.1} parent=31 // pred_check_branch
          %844 = sbr.rel (%p842) target = $region36
        $region35: #{visual_spatial_mha.1} parent=31 // pred_region
          %s845 = smul.u32 2, %s17
          %s847 = ssub.s32 256, 256
          %848 = vsyncadd %s838, %s847
          %s849 = smul.addr %s845, 128
          %s850 = scalar_lea.hbm %s3, %s849
          %s851 = sshll.u32 %s841, 4
          %s852 = int_to_ptr.vmem [resolvable:$true] %s851
          %857 = dma.vmem_to_hbm [thread:$0]  %s852, 256, %s850, %s838, 128, 128, 8
        $region36: #{visual_spatial_mha.1} parent=31 // pred_fallthru
          _
      $region32: #{visual_spatial_mha.1} parent=5 // pred_fallthru
        _
      %p858 = scmp.le.s32.totalorder 2, %s12
      // Predicated region
      $region37: #{visual_spatial_mha.1} parent=5 // pred_check
        %p859 = pneg %p858
      $region38: #{visual_spatial_mha.1} parent=5 // pred_check_branch
        %861 = sbr.rel (%p859) target = $region40
      $region39: #{visual_spatial_mha.1} parent=5 // pred_region
        %s862 = ssub.s32 %s12, 2
        // Predicated region
        $region41: #{visual_spatial_mha.1} parent=39 // pred_check
          %p863 = pneg %p109
        $region42: #{visual_spatial_mha.1} parent=39 // pred_check_branch
          %865 = sbr.rel (%p863) target = $region44
        $region43: #{visual_spatial_mha.1} parent=39 // pred_region
          %s866 = sand.u32 %s94, 1
          %s867 = scalar_lea.sflag [#allocation3], %s866
          %s868 = sand.u32 %s94, 1
          %s869 = smul.addr %s868, 16
          %s870 = scalar_lea.vmem [#allocation2], %s869
          %871 = dma.done %s867, 256
        $region44: #{visual_spatial_mha.1} parent=39 // pred_fallthru
          _
      $region40: #{visual_spatial_mha.1} parent=5 // pred_fallthru
        _
    $region6: #{visual_spatial_mha.1} parent=1 // loop_footer
      %s16 = sadd.s32 1, %s12
    $region7: #{visual_spatial_mha.1} parent=1 // loop_footer_branch
      %11 = sbr.rel target = $region3
    $region8: #{visual_spatial_mha.1} parent=1 // loop_exit
      _
    %872 = vsyncpa [#allocation3], 1
    %s873 = scalar_lea.sflag [#allocation3], 1
    %874 = vsyncpa %s873, 1

</llo_original>
